<compile_context>
chip_gen: v7x
topology: tpu7x:2x2x1
jax: 0.10.0
libtpu: 0.0.40
codegen_flags: <defaults>
</compile_context>

<pallas_src>
import jax
import jax.numpy as jnp
import numpy as np
from jax.experimental import pallas as pl
from jax.experimental.pallas import tpu as pltpu


# --------------------------------------------------------------------------
# Phase 1: hoisted input projection  gi = x @ W_ih_p + bias   (one big matmul)
# --------------------------------------------------------------------------
def input_proj_kernel(x_ref, w_ref, b_ref, gi_ref):
    # x: (T*B, Hp) bf16, w: (Hp, 3*Hp) bf16, b: (1, 3*Hp) f32 -> gi f32
    gi = jnp.dot(x_ref[...], w_ref[...], preferred_element_type=jnp.float32)
    gi_ref[...] = (gi + b_ref[...]).astype(gi_ref.dtype)


# --------------------------------------------------------------------------
# Phase 2: sequential GRU recurrence over time chunks
# --------------------------------------------------------------------------
def gru_recurrence_kernel(maxlen_ref,                 # scalar prefetch (SMEM)
                          gi_ref, len_ref, whh_ref, bhhn_ref,   # inputs
                          out_ref, hid_ref,            # outputs
                          h_scratch):                  # VMEM carry
    c = pl.program_id(0)
    Tc = gi_ref.shape[0]
    Hp = h_scratch.shape[-1]
    t0 = c * Tc

    @pl.when(c == 0)
    def _():
        h_scratch[...] = jnp.zeros_like(h_scratch)     # hidden=None -> zeros

    # Hoist loop-invariant loads out of the unrolled step loop.
    lengths = len_ref[...]                             # (B, 1) int32
    whh = whh_ref[...]                                 # (Hp, 3*Hp) bf16
    bhh_n = bhhn_ref[...]                              # (1, Hp) f32

    # Fully padded tail chunk (lengths sorted descending): skip all MXU/EUP
    # work, just emit zeros; carried h is unchanged.
    @pl.when(t0 >= maxlen_ref[0])
    def _():
        out_ref[...] = jnp.zeros_like(out_ref)

    @pl.when(t0 < maxlen_ref[0])
    def _():
        def step(i, h):
            gi = gi_ref[i]                             # (B, 3*Hp) f32, bias folded
            # recurrence matmul: bf16 inputs, f32 accumulate (MXU fast path)
            gh = jnp.dot(h.astype(jnp.bfloat16), whh,
                         preferred_element_type=jnp.float32)      # (B, 3*Hp)
            # gates (PyTorch order r, z, n); slices land on 128-lane bounds
            r = jax.nn.sigmoid(gi[:, 0:Hp] + gh[:, 0:Hp])
            z = jax.nn.sigmoid(gi[:, Hp:2 * Hp] + gh[:, Hp:2 * Hp])
            n = jnp.tanh(gi[:, 2 * Hp:] + r * (gh[:, 2 * Hp:] + bhh_n))
            h_new = (1.0 - z) * n + z * h
            # pack/pad semantics via vselect
            valid = (t0 + i) < lengths                 # (B, 1) bool
            out_ref[i] = jnp.where(valid, h_new, 0.0).astype(out_ref.dtype)
            return jnp.where(valid, h_new, h)

        h_fin = jax.lax.fori_loop(0, Tc, step, h_scratch[...], unroll=True)
        h_scratch[...] = h_fin

    # hidden block is revisited (constant index map); final writeback carries
    # the state after the last chunk.
    hid_ref[0] = h_scratch[...].astype(hid_ref.dtype)


# --------------------------------------------------------------------------
# Parameter padding helpers: gate-wise pad H -> Hp (lane-aligned gate stride)
# --------------------------------------------------------------------------
def _round_up(x, m):
    return (x + m - 1) // m * m


def _pad_gate_matrix(w, H, Hp):
    # w: (H, 3H) pre-transposed -> (Hp, 3*Hp); padding rows/cols are zero.
    out = jnp.zeros((Hp, 3 * Hp), w.dtype)
    for g in range(3):
        out = out.at[:H, g * Hp:g * Hp + H].set(w[:, g * H:(g + 1) * H])
    return out


def _pad_gate_bias(b, H, Hp):
    out = jnp.zeros((1, 3 * Hp), b.dtype)
    for g in range(3):
        out = out.at[:, g * Hp:g * Hp + H].set(b[:, g * H:(g + 1) * H])
    return out


# --------------------------------------------------------------------------
# Wrapper
# --------------------------------------------------------------------------
def base_encoder_forward(input_seq, input_lengths, emb_weight,
                         w_ih, w_hh, b_ih, b_hh, *, chunk_t=4):
    """input_seq: (T, B) int32 token ids; input_lengths: (B,) sorted desc."""
    T, B = input_seq.shape
    H = emb_weight.shape[1]
    Hp = _round_up(H, 128)                 # lane-dense hidden / gate stride
    Tc = min(chunk_t, T)                   # time-steps per grid iteration
    assert T % Tc == 0, "T must be divisible by the time-chunk size"
    n_chunks = T // Tc

    # glue: embedding gather (no clean Pallas equivalent at this size) + pad
    emb_pad = jnp.pad(emb_weight, ((0, 0), (0, Hp - H)))
    embedded = jnp.take(emb_pad, input_seq, axis=0)            # (T, B, Hp) f32
    x2d = embedded.reshape(T * B, Hp).astype(jnp.bfloat16)

    # gate-wise padded parameters; bf16 matmul operands
    wih_p = _pad_gate_matrix(w_ih, H, Hp).astype(jnp.bfloat16)
    whh_p = _pad_gate_matrix(w_hh, H, Hp).astype(jnp.bfloat16)
    bih_p = _pad_gate_bias(b_ih, H, Hp)
    bhh_p = _pad_gate_bias(b_hh, H, Hp)
    # fold b_ih (+ b_hh for r/z) into the hoisted projection bias;
    # the n-gate b_hh stays inside r*(...) per PyTorch GRU.
    bias_gi = bih_p.at[:, :2 * Hp].add(bhh_p[:, :2 * Hp])
    bhh_n = bhh_p[:, 2 * Hp:]                                  # (1, Hp)

    # -------- phase 1: one tall input-projection matmul --------
    gi2d = pl.pallas_call(
        input_proj_kernel,
        out_shape=jax.ShapeDtypeStruct((T * B, 3 * Hp), jnp.float32),
        grid_spec=pltpu.PrefetchScalarGridSpec(
            num_scalar_prefetch=0,
            grid=(1,),
            in_specs=[
                pl.BlockSpec((T * B, Hp), lambda i: (0, 0)),
                pl.BlockSpec((Hp, 3 * Hp), lambda i: (0, 0)),
                pl.BlockSpec((1, 3 * Hp), lambda i: (0, 0)),
            ],
            out_specs=pl.BlockSpec((T * B, 3 * Hp), lambda i: (0, 0)),
        ),
    )(x2d, wih_p, bias_gi)
    gi = gi2d.reshape(T, B, 3 * Hp)

    lengths = input_lengths.astype(jnp.int32).reshape(B, 1)
    max_len = jnp.max(input_lengths).astype(jnp.int32).reshape(1)

    # -------- phase 2: sequential recurrence over time chunks --------
    # NOTE(perf, v7x/large H): single-buffer the loop-invariant whh/bias blocks
    # (pipeline_mode=pl.Buffered(1)) and add a leading "parallel" batch grid
    # axis to use both TensorCores; irrelevant at this toy size.
    outputs_p, hidden_p = pl.pallas_call(
        gru_recurrence_kernel,
        out_shape=(
            jax.ShapeDtypeStruct((T, B, Hp), jnp.float32),
            jax.ShapeDtypeStruct((1, B, Hp), jnp.float32),
        ),
        grid_spec=pltpu.PrefetchScalarGridSpec(
            num_scalar_prefetch=1,                 # max_len -> SMEM scalar
            grid=(n_chunks,),
            in_specs=[
                pl.BlockSpec((Tc, B, 3 * Hp), lambda c, ml: (c, 0, 0)),  # gi chunk
                pl.BlockSpec((B, 1), lambda c, ml: (0, 0)),              # lengths
                pl.BlockSpec((Hp, 3 * Hp), lambda c, ml: (0, 0)),        # W_hh^T
                pl.BlockSpec((1, Hp), lambda c, ml: (0, 0)),             # b_hh (n)
            ],
            out_specs=[
                pl.BlockSpec((Tc, B, Hp), lambda c, ml: (c, 0, 0)),      # outputs
                pl.BlockSpec((1, B, Hp), lambda c, ml: (0, 0, 0)),       # hidden
            ],
            scratch_shapes=[pltpu.VMEM((B, Hp), jnp.float32)],           # h carry
        ),
        compiler_params=pltpu.CompilerParams(
            dimension_semantics=("arbitrary",)),   # time recurrence is sequential
    )(max_len, gi, lengths, whh_p, bhh_n)

    # strip lane padding (padding lanes are exact zeros by construction)
    return outputs_p[:, :, :H], hidden_p[:, :, :H]


# --------------------------------------------------------------------------
# Pure-JAX reference (same math, same bf16 matmul-operand quantization)
# --------------------------------------------------------------------------
def reference_forward(input_seq, input_lengths, emb_weight, w_ih, w_hh, b_ih, b_hh):
    embedded = jnp.take(emb_weight, input_seq, axis=0)
    T, B, H = embedded.shape
    lengths = input_lengths.astype(jnp.int32).reshape(B, 1)
    h = jnp.zeros((B, H), jnp.float32)
    wih_b = w_ih.astype(jnp.bfloat16)
    whh_b = w_hh.astype(jnp.bfloat16)
    outs = []
    for t in range(T):
        x = embedded[t].astype(jnp.bfloat16)
        gi = jnp.dot(x, wih_b, preferred_element_type=jnp.float32) + b_ih
        gh = jnp.dot(h.astype(jnp.bfloat16), whh_b,
                     preferred_element_type=jnp.float32) + b_hh
        r = jax.nn.sigmoid(gi[:, :H] + gh[:, :H])
        z = jax.nn.sigmoid(gi[:, H:2 * H] + gh[:, H:2 * H])
        n = jnp.tanh(gi[:, 2 * H:] + r * gh[:, 2 * H:])
        hn = (1.0 - z) * n + z * h
        valid = t < lengths
        outs.append(jnp.where(valid, hn, 0.0))
        h = jnp.where(valid, hn, h)
    return jnp.stack(outs, axis=0), h[None]


if __name__ == "__main__":
    # Small shapes implied by the module: seq T=8, batch B=2, hidden H=32,
    # vocab V=16, n_layers=1.
    T, B, H, V = 8, 2, 32, 16

    key = jax.random.PRNGKey(0)
    k_emb, k_ids, k_wih, k_whh, k_bih, k_bhh = jax.random.split(key, 6)

    emb_weight = jax.random.normal(k_emb, (V, H), jnp.float32)
    scale = 1.0 / np.sqrt(H)
    w_ih = jax.random.uniform(k_wih, (H, 3 * H), jnp.float32, -scale, scale)  # pre-transposed
    w_hh = jax.random.uniform(k_whh, (H, 3 * H), jnp.float32, -scale, scale)  # pre-transposed
    b_ih = jax.random.uniform(k_bih, (1, 3 * H), jnp.float32, -scale, scale)
    b_hh = jax.random.uniform(k_bhh, (1, 3 * H), jnp.float32, -scale, scale)

    input_seq = jax.random.randint(k_ids, (T, B), 0, V, jnp.int32)   # (T, B) token ids
    input_lengths = jnp.array([T, 5], jnp.int32)                     # sorted descending

    outputs, hidden = base_encoder_forward(
        input_seq, input_lengths, emb_weight, w_ih, w_hh, b_ih, b_hh)
    jax.block_until_ready((outputs, hidden))

    ref_out, ref_hid = reference_forward(
        input_seq, input_lengths, emb_weight, w_ih, w_hh, b_ih, b_hh)

    np.testing.assert_allclose(np.asarray(outputs), np.asarray(ref_out),
                               rtol=2e-3, atol=2e-3)
    np.testing.assert_allclose(np.asarray(hidden), np.asarray(ref_hid),
                               rtol=2e-3, atol=2e-3)
    assert outputs.shape == (T, B, H) and hidden.shape == (1, B, H)

    print("KERNEL_OK")
</pallas_src>

<mosaic_0001>
module attributes {stable_mosaic.version = 11 : i64} {
  func.func @input_proj_kernel(%arg0: i32, %arg1: memref<16x128xbf16, #tpu.memory_space<vmem>>, %arg2: memref<128x384xbf16, #tpu.memory_space<vmem>>, %arg3: memref<1x384xf32, #tpu.memory_space<vmem>>, %arg4: memref<16x384xf32, #tpu.memory_space<vmem>>) attributes {dimension_semantics = [#tpu.dimension_semantics<arbitrary>], iteration_bounds = array<i64: 1>, scalar_prefetch = 0 : i64, scratch_operands = 0 : i64, tpu.core_type = #tpu.core_type<tc>, window_params = [{pipeline_mode = #tpu.pipeline_mode<synchronous>, transform_indices = @transform_0, window_bounds = array<i64: 16, 128>}, {pipeline_mode = #tpu.pipeline_mode<synchronous>, transform_indices = @transform_1, window_bounds = array<i64: 128, 384>}, {pipeline_mode = #tpu.pipeline_mode<synchronous>, transform_indices = @transform_2, window_bounds = array<i64: 1, 384>}, {pipeline_mode = #tpu.pipeline_mode<synchronous>, transform_indices = @transform_3, window_bounds = array<i64: 16, 384>}]} {
    %c0 = arith.constant 0 : index
    %c0_0 = arith.constant 0 : index
    %0 = vector.load %arg1[%c0, %c0_0] : memref<16x128xbf16, #tpu.memory_space<vmem>>, vector<16x128xbf16>
    %c0_1 = arith.constant 0 : index
    %c0_2 = arith.constant 0 : index
    %1 = vector.load %arg2[%c0_1, %c0_2] : memref<128x384xbf16, #tpu.memory_space<vmem>>, vector<128x384xbf16>
    %cst = arith.constant dense<0.000000e+00> : vector<16x384xf32>
    %2 = tpu.matmul %0, %1, %cst {dimension_numbers = #tpu.dot_dimension_numbers<[1], [0], [0], [1], [0, 0, 1, 1], [], []>} : vector<16x128xbf16>, vector<128x384xbf16>, vector<16x384xf32> -> vector<16x384xf32>
    %c0_3 = arith.constant 0 : index
    %c0_4 = arith.constant 0 : index
    %3 = vector.load %arg3[%c0_3, %c0_4] : memref<1x384xf32, #tpu.memory_space<vmem>>, vector<1x384xf32>
    %4 = vector.broadcast %3 : vector<1x384xf32> to vector<16x384xf32>
    %5 = arith.addf %2, %4 : vector<16x384xf32>
    %c0_5 = arith.constant 0 : index
    %c0_6 = arith.constant 0 : index
    %6 = vector.load %arg4[%c0_5, %c0_6] : memref<16x384xf32, #tpu.memory_space<vmem>>, vector<16x384xf32>
    tpu.vector_store %arg4[%c0_5, %c0_6], %5 {strides = array<i32>} : memref<16x384xf32, #tpu.memory_space<vmem>>, vector<16x384xf32>,
    return
  }
  func.func @transform_0(%arg0: i32) -> (i32, i32) {
    %c0_i32 = arith.constant 0 : i32
    %c0_i32_0 = arith.constant 0 : i32
    %c0_i32_1 = arith.constant 0 : i32
    return %c0_i32, %c0_i32_0 : i32, i32
  }
  func.func @transform_1(%arg0: i32) -> (i32, i32) {
    %c0_i32 = arith.constant 0 : i32
    %c0_i32_0 = arith.constant 0 : i32
    %c0_i32_1 = arith.constant 0 : i32
    return %c0_i32, %c0_i32_0 : i32, i32
  }
  func.func @transform_2(%arg0: i32) -> (i32, i32) {
    %c0_i32 = arith.constant 0 : i32
    %c0_i32_0 = arith.constant 0 : i32
    %c0_i32_1 = arith.constant 0 : i32
    return %c0_i32, %c0_i32_0 : i32, i32
  }
  func.func @transform_3(%arg0: i32) -> (i32, i32) {
    %c0_i32 = arith.constant 0 : i32
    %c0_i32_0 = arith.constant 0 : i32
    %c0_i32_1 = arith.constant 0 : i32
    return %c0_i32, %c0_i32_0 : i32, i32
  }
}

</mosaic_0001>

<llo_original>
// kernel: tpu_custom_call.1
$region0: #{tpu_custom_call.1}
  #allocation0 [shape = 'u32[]', space=smem, size = 0x4, offset = 0x4, fixed_abs, tag = 'smem constant byte address 0x4 - core index']
  #allocation1 [shape = 'u32[144,128]{1,0:T(1,128)}', space=vmem, size = 0x12000, scoped, tag = 'internal scratch']
  %s0 = inlined_call_operand.hbm [shape: bf16[16,128], index: 0, kind: input, shape index: {}]
  %s1 = inlined_call_operand.hbm [shape: bf16[128,384], index: 1, kind: input, shape index: {}]
  %s2 = inlined_call_operand.vmem [shape: f32[1,384], index: 2, kind: input, shape index: {}]
  %s3 = inlined_call_operand.hbm [shape: f32[16,384], index: 3, kind: output, shape index: {}]
  %s4 = sld [smem:[#allocation0]]
  $region30: #{tpu_custom_call.1} parent=0
    _
  %s6 = ssub.s32 1, %s4
  %s7 = scalar_select 0, %s6, %s4
  $region1: #{tpu_custom_call.1} parent=0
    #allocation2 [shape = 'u8[4096]{0}', space=vmem, size = 0x1000, scoped, tag = 'input window, operand 0, single buffered']
    #allocation3 [shape = 's32[1]{0}', space=sflag, size = 0x4, scoped, tag = 'scoped memory for tpu_custom_call.1']
    #allocation4 [shape = 's32[1]{0}', space=sflag, size = 0x4, scoped, tag = 'scoped memory for tpu_custom_call.1']
    #allocation5 [shape = 'u8[98304]{0}', space=vmem, size = 0x18000, scoped, tag = 'input window, operand 1, single buffered']
    #allocation6 [shape = 's32[1]{0}', space=sflag, size = 0x4, scoped, tag = 'scoped memory for tpu_custom_call.1']
    #allocation7 [shape = 'u8[24576]{0}', space=vmem, size = 0x6000, scoped, tag = 'output window, operand 0, single buffered']
    %8 = vsyncpa [#allocation3], 0
    %9 = vsyncpa [#allocation6], 0
    %10 = vsyncpa [#allocation4], 0
    // Predicated region
    $region2: #{tpu_custom_call.1} parent=1 // pred_check
      _
    $region3: #{tpu_custom_call.1} parent=1 // pred_check_branch
      %12 = sbr.rel (0) target = $region5
    $region4: #{tpu_custom_call.1} parent=1 // pred_region
      %s14 = ssub.s32 128, 128
      %15 = vsyncadd [#allocation3], %s14
      %s16 = sshll.u32 [#allocation2], 4
      %s17 = int_to_ptr.vmem [resolvable:$true] %s16
      %22 = dma.hbm_to_vmem [thread:$0]  %s0, 128, %s17, [#allocation3], 64, 64, 4
    $region5: #{tpu_custom_call.1} parent=1 // pred_fallthru
      _
    // Predicated region
    $region6: #{tpu_custom_call.1} parent=1 // pred_check
      _
    $region7: #{tpu_custom_call.1} parent=1 // pred_check_branch
      %24 = sbr.rel (0) target = $region9
    $region8: #{tpu_custom_call.1} parent=1 // pred_region
      %s26 = ssub.s32 3072, 3072
      %27 = vsyncadd [#allocation6], %s26
      %s28 = sshll.u32 [#allocation5], 4
      %s29 = int_to_ptr.vmem [resolvable:$true] %s28
      %34 = dma.hbm_to_vmem [thread:$0]  %s1, 3072, %s29, [#allocation6], 192, 192, 12
    $region9: #{tpu_custom_call.1} parent=1 // pred_fallthru
      _
    // Predicated region
    $region10: #{tpu_custom_call.1} parent=1 // pred_check
      _
    $region11: #{tpu_custom_call.1} parent=1 // pred_check_branch
      %36 = sbr.rel (0) target = $region13
    $region12: #{tpu_custom_call.1} parent=1 // pred_region
      _
    $region13: #{tpu_custom_call.1} parent=1 // pred_fallthru
      _
    // Predicated region
    $region14: #{tpu_custom_call.1} parent=1 // pred_check
      _
    $region15: #{tpu_custom_call.1} parent=1 // pred_check_branch
      %38 = sbr.rel (0) target = $region17
    $region16: #{tpu_custom_call.1} parent=1 // pred_region
      %39 = dma.done [#allocation3], 128
    $region17: #{tpu_custom_call.1} parent=1 // pred_fallthru
      _
    // Predicated region
    $region18: #{tpu_custom_call.1} parent=1 // pred_check
      _
    $region19: #{tpu_custom_call.1} parent=1 // pred_check_branch
      %41 = sbr.rel (0) target = $region21
    $region20: #{tpu_custom_call.1} parent=1 // pred_region
      %42 = dma.done [#allocation6], 3072
    $region21: #{tpu_custom_call.1} parent=1 // pred_fallthru
      _
    %v44 = vld [vmem:[#allocation2] sm:$0xf]
    %v45 = vld [vmem:[#allocation2 + $0x4] sm:$0xf]
    %v46 = vld [vmem:[#allocation5] sm:$0xff]
    %v47 = vld [vmem:[#allocation5 + $0x8] sm:$0xf]
    %v48 = vld [vmem:[#allocation5 + $0xc] sm:$0xff]
    %v49 = vld [vmem:[#allocation5 + $0x14] sm:$0xf]
    %v50 = vld [vmem:[#allocation5 + $0x18] sm:$0xff]
    %v51 = vld [vmem:[#allocation5 + $0x20] sm:$0xf]
    %v52 = vld [vmem:[#allocation5 + $0x24] sm:$0xff]
    %v53 = vld [vmem:[#allocation5 + $0x2c] sm:$0xf]
    %v54 = vld [vmem:[#allocation5 + $0x30] sm:$0xff]
    %v55 = vld [vmem:[#allocation5 + $0x38] sm:$0xf]
    %v56 = vld [vmem:[#allocation5 + $0x3c] sm:$0xff]
    %v57 = vld [vmem:[#allocation5 + $0x44] sm:$0xf]
    %v58 = vld [vmem:[#allocation5 + $0x48] sm:$0xff]
    %v59 = vld [vmem:[#allocation5 + $0x50] sm:$0xf]
    %v60 = vld [vmem:[#allocation5 + $0x54] sm:$0xff]
    %v61 = vld [vmem:[#allocation5 + $0x5c] sm:$0xf]
    %v62 = vld [vmem:[#allocation5 + $0x60] sm:$0xff]
    %v63 = vld [vmem:[#allocation5 + $0x68] sm:$0xf]
    %v64 = vld [vmem:[#allocation5 + $0x6c] sm:$0xff]
    %v65 = vld [vmem:[#allocation5 + $0x74] sm:$0xf]
    %v66 = vld [vmem:[#allocation5 + $0x78] sm:$0xff]
    %v67 = vld [vmem:[#allocation5 + $0x80] sm:$0xf]
    %v68 = vld [vmem:[#allocation5 + $0x84] sm:$0xff]
    %v69 = vld [vmem:[#allocation5 + $0x8c] sm:$0xf]
    %v70 = vld [vmem:[#allocation5 + $0x90] sm:$0xff]
    %v71 = vld [vmem:[#allocation5 + $0x98] sm:$0xf]
    %v72 = vld [vmem:[#allocation5 + $0x9c] sm:$0xff]
    %v73 = vld [vmem:[#allocation5 + $0xa4] sm:$0xf]
    %v74 = vld [vmem:[#allocation5 + $0xa8] sm:$0xff]
    %v75 = vld [vmem:[#allocation5 + $0xb0] sm:$0xf]
    %v76 = vld [vmem:[#allocation5 + $0xb4] sm:$0xff]
    %v77 = vld [vmem:[#allocation5 + $0xbc] sm:$0xf]
    %v78 = vld [vmem:[%s2] sm:$0x7]
    %v80 = vlaneseq
    %v81 = vshrl.u32 %v80, 7
    %v82 = vsub.s32 0, %v81
    %v83 = vrot.slane %v78, %v82
    %v84 = vlaneseq
    %v85 = vshrl.u32 %v84, 7
    %v86 = vsub.s32 1, %v85
    %v87 = vrot.slane %v78, %v86
    %v88 = vlaneseq
    %v89 = vshrl.u32 %v88, 7
    %v90 = vsub.s32 2, %v89
    %v91 = vrot.slane %v78, %v90
    %v97 = vunpack.c.l.b16 %v44
    %v98 = vunpack.c.l.b16 %v45
    %v99 = vpack.c.b16 %v98, %v97
    %v133 = vunpack.c.l.b16 %v46
    %v134 = vunpack.c.h.b16 %v46
    %v135 = vunpack.c.l.b16 %v47
    %v136 = vunpack.c.l.b16 %v48
    %v137 = vunpack.c.h.b16 %v48
    %v138 = vunpack.c.l.b16 %v49
    %v139 = vunpack.c.l.b16 %v50
    %v140 = vunpack.c.h.b16 %v50
    %v141 = vunpack.c.l.b16 %v51
    %v142 = vunpack.c.l.b16 %v52
    %v143 = vunpack.c.h.b16 %v52
    %v144 = vunpack.c.l.b16 %v53
    %v145 = vunpack.c.l.b16 %v54
    %v146 = vunpack.c.h.b16 %v54
    %v147 = vunpack.c.l.b16 %v55
    %v148 = vunpack.c.l.b16 %v56
    %v149 = vunpack.c.h.b16 %v56
    %v150 = vunpack.c.l.b16 %v57
    %v151 = vunpack.c.l.b16 %v58
    %v152 = vunpack.c.h.b16 %v58
    %v153 = vunpack.c.l.b16 %v59
    %v154 = vunpack.c.l.b16 %v60
    %v155 = vunpack.c.h.b16 %v60
    %v156 = vunpack.c.l.b16 %v61
    %v157 = vunpack.c.l.b16 %v62
    %v158 = vunpack.c.h.b16 %v62
    %v159 = vunpack.c.l.b16 %v63
    %v160 = vunpack.c.l.b16 %v64
    %v161 = vunpack.c.h.b16 %v64
    %v162 = vunpack.c.l.b16 %v65
    %v163 = vunpack.c.l.b16 %v66
    %v164 = vunpack.c.h.b16 %v66
    %v165 = vunpack.c.l.b16 %v67
    %v166 = vunpack.c.l.b16 %v68
    %v167 = vunpack.c.h.b16 %v68
    %v168 = vunpack.c.l.b16 %v69
    %v169 = vunpack.c.l.b16 %v70
    %v170 = vunpack.c.h.b16 %v70
    %v171 = vunpack.c.l.b16 %v71
    %v172 = vunpack.c.l.b16 %v72
    %v173 = vunpack.c.h.b16 %v72
    %v174 = vunpack.c.l.b16 %v73
    %v175 = vunpack.c.l.b16 %v74
    %v176 = vunpack.c.h.b16 %v74
    %v177 = vunpack.c.l.b16 %v75
    %v178 = vunpack.c.l.b16 %v76
    %v179 = vunpack.c.h.b16 %v76
    %v180 = vunpack.c.l.b16 %v77
    %v181 = vpack.c.b16 %v136, %v133
    %v182 = vpack.c.b16 %v137, %v134
    %v183 = vpack.c.b16 %v138, %v135
    %v184 = vpack.c.b16 %v142, %v139
    %v185 = vpack.c.b16 %v143, %v140
    %v186 = vpack.c.b16 %v144, %v141
    %v187 = vpack.c.b16 %v148, %v145
    %v188 = vpack.c.b16 %v149, %v146
    %v189 = vpack.c.b16 %v150, %v147
    %v190 = vpack.c.b16 %v154, %v151
    %v191 = vpack.c.b16 %v155, %v152
    %v192 = vpack.c.b16 %v156, %v153
    %v193 = vpack.c.b16 %v160, %v157
    %v194 = vpack.c.b16 %v161, %v158
    %v195 = vpack.c.b16 %v162, %v159
    %v196 = vpack.c.b16 %v166, %v163
    %v197 = vpack.c.b16 %v167, %v164
    %v198 = vpack.c.b16 %v168, %v165
    %v199 = vpack.c.b16 %v172, %v169
    %v200 = vpack.c.b16 %v173, %v170
    %v201 = vpack.c.b16 %v174, %v171
    %v202 = vpack.c.b16 %v178, %v175
    %v203 = vpack.c.b16 %v179, %v176
    %v204 = vpack.c.b16 %v180, %v177
    %229 = vmatprep.subr.bf16.mxu0 %v182
    %230 = vmatpush1.bf16.msra.mxu0 %v181
    %231 = vmatprep.subr.bf16.mxu0 %v185
    %232 = vmatpush1.bf16.msra.mxu0 %v184
    %233 = vmatprep.subr.bf16.mxu0 %v188
    %234 = vmatpush1.bf16.msra.mxu0 %v187
    %235 = vmatprep.subr.bf16.mxu0 %v191
    %236 = vmatpush1.bf16.msra.mxu0 %v190
    %237 = vmatprep.subr.bf16.mxu0 %v194
    %238 = vmatpush1.bf16.msra.mxu0 %v193
    %239 = vmatprep.subr.bf16.mxu0 %v197
    %240 = vmatpush1.bf16.msra.mxu0 %v196
    %241 = vmatprep.subr.bf16.mxu0 %v200
    %242 = vmatpush1.bf16.msra.mxu0 %v199
    %243 = vmatprep.subr.bf16.mxu0 %v203
    %244 = vmatpush1.bf16.msra.mxu0 %v202
    %245 = vmatprep.subr.bf16.mxu0 0
    %246 = vmatpush1.bf16.msra.mxu0 0
    %247 = vmatprep.subr.bf16.mxu0 0
    %248 = vmatpush1.bf16.msra.mxu0 0
    %249 = vmatprep.subr.bf16.mxu0 0
    %250 = vmatpush1.bf16.msra.mxu0 0
    %251 = vmatprep.subr.bf16.mxu0 0
    %252 = vmatpush1.bf16.msra.mxu0 0
    %253 = vmatprep.subr.bf16.mxu0 0
    %254 = vmatpush1.bf16.msra.mxu0 0
    %255 = vmatprep.subr.bf16.mxu0 0
    %256 = vmatpush1.bf16.msra.mxu0 0
    %257 = vmatprep.subr.bf16.mxu0 0
    %258 = vmatpush1.bf16.msra.mxu0 0
    %259 = vmatprep.subr.bf16.mxu0 0
    %260 = vmatpush1.bf16.msra.mxu0 0
    %261 = vmatprep.mubr.bf16.mxu0 0
    %262 = vmatmul.mubr.bf16.gmra.mrb[0].mxu0 %v99
    %v263 = vpop.f32.mrb[0].mxu0
    %v264 = vadd.f32 %v83, %v263
    %v265 = vpop.f32.mrb[0].mxu0
    %v266 = vadd.f32 %v87, %v265
    %v267 = vpop.f32.mrb[0].mxu0
    %v268 = vadd.f32 %v83, %v267
    %v269 = vpop.f32.mrb[0].mxu0
    %v270 = vadd.f32 %v87, %v269
    %271 = vdwg.mxu0
    %272 = vmatprep.subr.bf16.mxu0 0
    %273 = vmatpush1.bf16.msra.mxu0 %v183
    %274 = vmatprep.subr.bf16.mxu0 0
    %275 = vmatpush1.bf16.msra.mxu0 %v186
    %276 = vmatprep.subr.bf16.mxu0 0
    %277 = vmatpush1.bf16.msra.mxu0 %v189
    %278 = vmatprep.subr.bf16.mxu0 0
    %279 = vmatpush1.bf16.msra.mxu0 %v192
    %280 = vmatprep.subr.bf16.mxu0 0
    %281 = vmatpush1.bf16.msra.mxu0 %v195
    %282 = vmatprep.subr.bf16.mxu0 0
    %283 = vmatpush1.bf16.msra.mxu0 %v198
    %284 = vmatprep.subr.bf16.mxu0 0
    %285 = vmatpush1.bf16.msra.mxu0 %v201
    %286 = vmatprep.subr.bf16.mxu0 0
    %287 = vmatpush1.bf16.msra.mxu0 %v204
    %288 = vmatprep.subr.bf16.mxu0 0
    %289 = vmatpush1.bf16.msra.mxu0 0
    %290 = vmatprep.subr.bf16.mxu0 0
    %291 = vmatpush1.bf16.msra.mxu0 0
    %292 = vmatprep.subr.bf16.mxu0 0
    %293 = vmatpush1.bf16.msra.mxu0 0
    %294 = vmatprep.subr.bf16.mxu0 0
    %295 = vmatpush1.bf16.msra.mxu0 0
    %296 = vmatprep.subr.bf16.mxu0 0
    %297 = vmatpush1.bf16.msra.mxu0 0
    %298 = vmatprep.subr.bf16.mxu0 0
    %299 = vmatpush1.bf16.msra.mxu0 0
    %300 = vmatprep.subr.bf16.mxu0 0
    %301 = vmatpush1.bf16.msra.mxu0 0
    %302 = vmatprep.subr.bf16.mxu0 0
    %303 = vmatpush1.bf16.msra.mxu0 0
    %304 = vmatprep.mubr.bf16.mxu0 0
    %305 = vmatmul.mubr.bf16.gmra.mrb[0].mxu0 %v99
    %v306 = vpop.f32.mrb[0].mxu0
    %v307 = vadd.f32 %v91, %v306
    %v308 = vpop.f32.mrb[0].mxu0
    %v309 = vpop.f32.mrb[0].mxu0
    %v310 = vadd.f32 %v91, %v309
    %v311 = vpop.f32.mrb[0].mxu0
    %312 = vdwg.mxu0
    %313 = vst [vmem:[#allocation7] sm:$0xff] %v264
    %314 = vst [vmem:[#allocation7 + $0x8] sm:$0xff] %v266
    %315 = vst [vmem:[#allocation7 + $0x10] sm:$0xff] %v307
    %316 = vst [vmem:[#allocation7 + $0x18] sm:$0xff] %v268
    %317 = vst [vmem:[#allocation7 + $0x20] sm:$0xff] %v270
    %318 = vst [vmem:[#allocation7 + $0x28] sm:$0xff] %v310
    // Predicated region
    $region22: #{tpu_custom_call.1} parent=1 // pred_check
      _
    $region23: #{tpu_custom_call.1} parent=1 // pred_check_branch
      %320 = sbr.rel (0) target = $region25
    $region24: #{tpu_custom_call.1} parent=1 // pred_region
      %s322 = ssub.s32 768, 768
      %323 = vsyncadd [#allocation4], %s322
      %s324 = sshll.u32 [#allocation7], 4
      %s325 = int_to_ptr.vmem [resolvable:$true] %s324
      %330 = dma.vmem_to_hbm [thread:$0]  %s325, 768, %s3, [#allocation4], 384, 384, 24
    $region25: #{tpu_custom_call.1} parent=1 // pred_fallthru
      _
    // Predicated region
    $region26: #{tpu_custom_call.1} parent=1 // pred_check
      _
    $region27: #{tpu_custom_call.1} parent=1 // pred_check_branch
      %332 = sbr.rel (0) target = $region29
    $region28: #{tpu_custom_call.1} parent=1 // pred_region
      %333 = dma.done [#allocation4], 768
    $region29: #{tpu_custom_call.1} parent=1 // pred_fallthru
      _
    %334 = vsyncpa [#allocation3], 1
    %335 = vsyncpa [#allocation6], 1
    %336 = vsyncpa [#allocation4], 1

</llo_original>
